<compile_context>
chip_gen: v5e
topology: v5e:2x2
jax: 0.10.0
libtpu: 0.0.40
codegen_flags: <defaults>
</compile_context>

<pallas_src>
import jax
import jax.numpy as jnp
from jax.experimental import pallas as pl
from jax.experimental.pallas import tpu as pltpu


def _round_up(n, m):
    return ((n + m - 1) // m) * m


def _linear_relu_kernel(x_ref, w_ref, b_ref, o_ref):
    # x_ref: (TB, IN)  w_ref: (IN, OUT)  b_ref: (1, OUT)  o_ref: (TB, OUT)
    y = jax.lax.dot_general(
        x_ref[...], w_ref[...],
        dimension_numbers=(((1,), (0,)), ((), ())),   # x lane-axis vs W sublane-axis
        preferred_element_type=jnp.float32,
    )
    y = y + b_ref[...]                                # f32 bias add, broadcast over batch
    o_ref[...] = jnp.maximum(y, 0.0).astype(o_ref.dtype)


def make_toy_model1(weight, bias, *, block_b=2048, small_cutoff=512):
    """Build the ToyModel1 forward once.

    weight: (OUT, IN) float32  (PyTorch nn.Linear layout)
    bias:   (OUT,)    float32
    Returns a jitted forward(x: (B, IN)) -> (B, OUT) computing relu(x @ W.T + b).
    """
    OUT, IN = weight.shape
    # Hoisted, one-time prep: pre-transpose to (IN, OUT) so the kernel contracts
    # x's lane axis against W's sublane axis (MXU-native, no in-kernel transpose).
    w_t = jnp.asarray(weight).T.astype(jnp.float32)          # (IN, OUT)
    b_2d = jnp.asarray(bias).astype(jnp.float32).reshape(1, OUT)

    @jax.jit
    def forward(x):
        B = x.shape[0]
        if B <= small_cutoff:
            # Tiny batch: single invocation, no grid, no padding, no extra dispatches.
            return pl.pallas_call(
                _linear_relu_kernel,
                out_shape=jax.ShapeDtypeStruct((B, OUT), x.dtype),
            )(x, w_t, b_2d)

        # Batch-tiled path: W/bias stay VMEM-resident across tiles; the ragged
        # last tile's out-of-bounds rows are masked on write by Pallas.
        # Cap the tile at ceil(B/2) (rounded to sublane multiple) so there are
        # always >=2 grid steps -> both v7x TensorCores get work.
        tb = min(block_b, _round_up(pl.cdiv(B, 2), 8))
        return pl.pallas_call(
            _linear_relu_kernel,
            out_shape=jax.ShapeDtypeStruct((B, OUT), x.dtype),
            grid=(pl.cdiv(B, tb),),
            in_specs=[
                pl.BlockSpec((tb, IN), lambda i: (i, 0)),
                pl.BlockSpec((IN, OUT), lambda i: (0, 0)),
                pl.BlockSpec((1, OUT), lambda i: (0, 0)),
            ],
            out_specs=pl.BlockSpec((tb, OUT), lambda i: (i, 0)),
            compiler_params=pltpu.CompilerParams(
                dimension_semantics=("parallel",),
            ),
        )(x, w_t, b_2d)

    return forward


if __name__ == "__main__":
    key = jax.random.PRNGKey(0)
    k_x, k_w, k_b, k_x2 = jax.random.split(key, 4)

    batch, in_features, out_features = 8, 10, 10

    # Deterministic params (mimicking nn.Linear's uniform(-1/sqrt(in), 1/sqrt(in))).
    bound = 1.0 / (in_features ** 0.5)
    weight = jax.random.uniform(
        k_w, (out_features, in_features), jnp.float32, minval=-bound, maxval=bound
    )
    bias = jax.random.uniform(
        k_b, (out_features,), jnp.float32, minval=-bound, maxval=bound
    )

    forward = make_toy_model1(weight, bias)

    # --- small-batch (no-grid, no-padding) path ---
    x = jax.random.normal(k_x, (batch, in_features), jnp.float32)
    out = jax.block_until_ready(forward(x))
    ref = jnp.maximum(x @ weight.T + bias, 0.0)
    assert out.shape == (batch, out_features)
    assert jnp.allclose(out, ref, atol=1e-5), "small-batch mismatch vs reference"

    # --- batch-tiled path (cdiv grid, ragged masked last tile, >=2 parallel steps) ---
    big_batch = 1030  # > small_cutoff, not a multiple of the tile size
    x_big = jax.random.normal(k_x2, (big_batch, in_features), jnp.float32)
    out_big = jax.block_until_ready(forward(x_big))
    ref_big = jnp.maximum(x_big @ weight.T + bias, 0.0)
    assert out_big.shape == (big_batch, out_features)
    assert jnp.allclose(out_big, ref_big, atol=1e-5), "tiled-batch mismatch vs reference"

    print("KERNEL_OK")
</pallas_src>

<mosaic_0001>
module attributes {stable_mosaic.version = 11 : i64} {
  func.func @_linear_relu_kernel(%arg0: memref<8x10xf32, #tpu.memory_space<vmem>>, %arg1: memref<10x10xf32, #tpu.memory_space<vmem>>, %arg2: memref<1x10xf32, #tpu.memory_space<vmem>>, %arg3: memref<8x10xf32, #tpu.memory_space<vmem>>) attributes {dimension_semantics = [], scalar_prefetch = 0 : i64, scratch_operands = 0 : i64, tpu.core_type = #tpu.core_type<tc>} {
    %c0 = arith.constant 0 : index
    %c0_0 = arith.constant 0 : index
    %0 = vector.load %arg0[%c0, %c0_0] : memref<8x10xf32, #tpu.memory_space<vmem>>, vector<8x10xf32>
    %c0_1 = arith.constant 0 : index
    %c0_2 = arith.constant 0 : index
    %1 = vector.load %arg1[%c0_1, %c0_2] : memref<10x10xf32, #tpu.memory_space<vmem>>, vector<10x10xf32>
    %cst = arith.constant dense<0.000000e+00> : vector<8x10xf32>
    %2 = tpu.matmul %0, %1, %cst {dimension_numbers = #tpu.dot_dimension_numbers<[1], [0], [0], [1], [0, 0, 1, 1], [], []>} : vector<8x10xf32>, vector<10x10xf32>, vector<8x10xf32> -> vector<8x10xf32>
    %c0_3 = arith.constant 0 : index
    %c0_4 = arith.constant 0 : index
    %3 = vector.load %arg2[%c0_3, %c0_4] : memref<1x10xf32, #tpu.memory_space<vmem>>, vector<1x10xf32>
    %4 = vector.broadcast %3 : vector<1x10xf32> to vector<8x10xf32>
    %5 = arith.addf %2, %4 : vector<8x10xf32>
    %cst_5 = arith.constant 0.000000e+00 : f32
    %6 = vector.broadcast %cst_5 : f32 to vector<8x10xf32>
    %7 = arith.maximumf %5, %6 : vector<8x10xf32>
    %c0_6 = arith.constant 0 : index
    %c0_7 = arith.constant 0 : index
    %8 = vector.load %arg3[%c0_6, %c0_7] : memref<8x10xf32, #tpu.memory_space<vmem>>, vector<8x10xf32>
    tpu.vector_store %arg3[%c0_6, %c0_7], %7 {strides = array<i32>} : memref<8x10xf32, #tpu.memory_space<vmem>>, vector<8x10xf32>,
    return
  }
}

</mosaic_0001>

<llo_original>
// kernel: forward.1
$region0: #{forward.1}
  #allocation0 [shape = 'u32[]', space=smem, size = 0x4, offset = 0x4, fixed_abs, tag = 'smem constant byte address 0x4 - core index']
  #allocation1 [shape = 'u32[72,128]{1,0:T(1,128)}', space=vmem, size = 0x9000, scoped, tag = 'internal scratch']
  %s0 = inlined_call_operand.hbm [shape: f32[8,10], index: 0, kind: input, shape index: {}]
  %s1 = inlined_call_operand.hbm [shape: f32[10,10], index: 1, kind: input, shape index: {}]
  %s2 = inlined_call_operand.vmem [shape: f32[1,10], index: 2, kind: input, shape index: {}]
  %s3 = inlined_call_operand.hbm [shape: f32[8,10], index: 3, kind: output, shape index: {}]
  %s4 = sld [smem:[#allocation0]]
  $region30: #{forward.1} parent=0
    _
  %s6 = ssub.s32 1, %s4
  %s7 = scalar_select 0, %s6, %s4
  $region1: #{forward.1} parent=0
    #allocation2 [shape = 'u8[4096]{0}', space=vmem, size = 0x1000, scoped, tag = 'input window, operand 0, single buffered']
    #allocation3 [shape = 's32[1]{0}', space=sflag, size = 0x4, scoped, tag = 'scoped memory for forward.1']
    #allocation4 [shape = 's32[1]{0}', space=sflag, size = 0x4, scoped, tag = 'scoped memory for forward.1']
    #allocation5 [shape = 'u8[8192]{0}', space=vmem, size = 0x2000, scoped, tag = 'input window, operand 1, single buffered']
    #allocation6 [shape = 's32[1]{0}', space=sflag, size = 0x4, scoped, tag = 'scoped memory for forward.1']
    #allocation7 [shape = 'u8[4096]{0}', space=vmem, size = 0x1000, scoped, tag = 'output window, operand 0, single buffered']
    %8 = vsyncpa [#allocation3], 0
    %9 = vsyncpa [#allocation6], 0
    %10 = vsyncpa [#allocation4], 0
    // Predicated region
    $region2: #{forward.1} parent=1 // pred_check
      _
    $region3: #{forward.1} parent=1 // pred_check_branch
      %12 = sbr.rel (0) target = $region5
    $region4: #{forward.1} parent=1 // pred_region
      %14 = vsyncadd [#allocation3], 0
      %s16 = sshll.u32 %s0, 4
      %s17 = int_to_ptr.hbm [resolvable:$true] %s16
      %s18 = sshll.u32 [#allocation2], 4
      %s19 = int_to_ptr.vmem [resolvable:$true] %s18
      %21 = dma.hbm_to_vmem [thread:$0]  %s17, 128, %s19, [#allocation3]
    $region5: #{forward.1} parent=1 // pred_fallthru
      _
    // Predicated region
    $region6: #{forward.1} parent=1 // pred_check
      _
    $region7: #{forward.1} parent=1 // pred_check_branch
      %23 = sbr.rel (0) target = $region9
    $region8: #{forward.1} parent=1 // pred_region
      %25 = vsyncadd [#allocation6], 0
      %s26 = sshll.u32 %s1, 4
      %s27 = int_to_ptr.hbm [resolvable:$true] %s26
      %s28 = sshll.u32 [#allocation5], 4
      %s29 = int_to_ptr.vmem [resolvable:$true] %s28
      %34 = dma.hbm_to_vmem [thread:$0]  %s27, 256, %s29, [#allocation6], 128, 128, 8
    $region9: #{forward.1} parent=1 // pred_fallthru
      _
    // Predicated region
    $region10: #{forward.1} parent=1 // pred_check
      _
    $region11: #{forward.1} parent=1 // pred_check_branch
      %36 = sbr.rel (0) target = $region13
    $region12: #{forward.1} parent=1 // pred_region
      _
    $region13: #{forward.1} parent=1 // pred_fallthru
      _
    // Predicated region
    $region14: #{forward.1} parent=1 // pred_check
      _
    $region15: #{forward.1} parent=1 // pred_check_branch
      %38 = sbr.rel (0) target = $region17
    $region16: #{forward.1} parent=1 // pred_region
      %40 = dma.done [#allocation3], 128
    $region17: #{forward.1} parent=1 // pred_fallthru
      _
    // Predicated region
    $region18: #{forward.1} parent=1 // pred_check
      _
    $region19: #{forward.1} parent=1 // pred_check_branch
      %42 = sbr.rel (0) target = $region21
    $region20: #{forward.1} parent=1 // pred_region
      %44 = dma.done [#allocation6], 256
    $region21: #{forward.1} parent=1 // pred_fallthru
      _
    %v45 = vld [vmem:[#allocation2] sm:$0xff]
    %v46 = vld [vmem:[#allocation5] sm:$0xff]
    %v47 = vld [vmem:[#allocation5 + $0x8] sm:$0x3]
    %v48 = vld [vmem:[%s2] sm:$0x1]
    %v50 = vperm.slane %v48, 0
    %vm52 = vcmask 80896
    %v54 = vsel %vm52, %v45, 0
    %vm56 = vcmask 1041408
    %v58 = vsel %vm56, %v47, 0
    %60 = vmatpush.msra.mxu0 0.0
    %61 = vmatpush.msra.mxu0 0.0
    %62 = vmatpush.msra.mxu0 0.0
    %63 = vmatpush.msra.mxu0 0.0
    %64 = vmatpush.msra.mxu0 0.0
    %65 = vmatpush.msra.mxu0 0.0
    %66 = vmatpush.msra.mxu0 0.0
    %67 = vmatpush.msra.mxu0 0.0
    %68 = vmatpush.msra.mxu0 0.0
    %69 = vmatpush.msra.mxu0 0.0
    %70 = vmatpush.msra.mxu0 0.0
    %71 = vmatpush.msra.mxu0 0.0
    %72 = vmatpush.msra.mxu0 0.0
    %73 = vmatpush.msra.mxu0 0.0
    %74 = vmatpush.msra.mxu0 %v58
    %75 = vmatpush.msra.mxu0 %v46
    %76 = vmatmul.f32.gmra.mxu0 %v54
    %v77 = vpop.f32.mrf.mxu0
    %v78 = vadd.f32 %v50, %v77
    %79 = vdwg.mxu0
    %v80 = vmax.f32 %v78, 0.0
    %81 = vst.msk [vmem:[#allocation7] sm:$0xff] %vm52, %v80
    // Predicated region
    $region22: #{forward.1} parent=1 // pred_check
      _
    $region23: #{forward.1} parent=1 // pred_check_branch
      %83 = sbr.rel (0) target = $region25
    $region24: #{forward.1} parent=1 // pred_region
      %85 = vsyncadd [#allocation4], 0
      %s87 = sshll.u32 [#allocation7], 4
      %s88 = int_to_ptr.vmem [resolvable:$true] %s87
      %s89 = sshll.u32 %s3, 4
      %s90 = int_to_ptr.hbm [resolvable:$true] %s89
      %92 = dma.vmem_to_hbm [thread:$0]  %s88, 128, %s90, [#allocation4]
    $region25: #{forward.1} parent=1 // pred_fallthru
      _
    // Predicated region
    $region26: #{forward.1} parent=1 // pred_check
      _
    $region27: #{forward.1} parent=1 // pred_check_branch
      %94 = sbr.rel (0) target = $region29
    $region28: #{forward.1} parent=1 // pred_region
      %96 = dma.done [#allocation4], 128
    $region29: #{forward.1} parent=1 // pred_fallthru
      _
    %97 = vsyncpa [#allocation3], 1
    %98 = vsyncpa [#allocation6], 1
    %99 = vsyncpa [#allocation4], 1

</llo_original>
